<compile_context>
chip_gen: v5e
topology: v5e:2x2
jax: 0.10.0
libtpu: 0.0.40
codegen_flags: <defaults>
</compile_context>

<pallas_src>
from dataclasses import dataclass
from typing import List, Tuple

import numpy as np
import jax
import jax.numpy as jnp
from jax.experimental import pallas as pl
from jax.experimental.pallas import tpu as pltpu

_LANE = 128          # minimum lane-dense spatial extent worth a Pallas launch
_MAX_TILE_S = 1024   # spatial tile cap (lanes); multiple of 128


# ----------------------------- Pallas kernel ------------------------------
def _mix_kernel(x_ref, w_ref, b_ref, o_ref):
    # x_ref: (1, Cin, TS), w_ref: (Cout, Cin), b_ref: (Cout, 1),
    # o_ref: (1, Cout, TS)
    x = x_ref[0]          # (Cin, TS)   spatial on lanes
    w = w_ref[...]        # (Cout, Cin)
    b = b_ref[...]        # (Cout, 1)
    cin = w.shape[1]
    if cin <= 8:
        # Tiny contraction dim: VPU broadcast-multiply-adds over a lane-dense
        # tile beat pushing a K<=8 matmul through the MXU.
        acc = w[:, 0:1] * x[0:1, :]
        for c in range(1, cin):
            acc = acc + w[:, c:c + 1] * x[c:c + 1, :]
    else:
        acc = jnp.dot(w, x, preferred_element_type=jnp.float32)
    o_ref[0] = (acc + b).astype(o_ref.dtype)


def _pointwise_channel_mix_pallas(x3: jax.Array, w: jax.Array,
                                  b: jax.Array) -> jax.Array:
    """x3: (B, Cin, S), w: (Cout, Cin), b: (Cout,) -> (B, Cout, S)."""
    B, Cin, S = x3.shape
    Cout = w.shape[0]
    # Full-extent block when S fits (works for any S), else a 128-multiple
    # tile; Mosaic masks the partial last block (no host pad / slice needed).
    ts = S if S <= _MAX_TILE_S else _MAX_TILE_S
    b2 = b.reshape(Cout, 1)

    return pl.pallas_call(
        _mix_kernel,
        out_shape=jax.ShapeDtypeStruct((B, Cout, S), x3.dtype),
        grid_spec=pltpu.PrefetchScalarGridSpec(
            num_scalar_prefetch=0,
            grid=(B, pl.cdiv(S, ts)),
            in_specs=[
                pl.BlockSpec((1, Cin, ts), lambda bi, si: (bi, 0, si)),  # X tile
                pl.BlockSpec((Cout, Cin), lambda bi, si: (0, 0)),        # weight (resident)
                pl.BlockSpec((Cout, 1), lambda bi, si: (0, 0)),          # bias (resident)
            ],
            out_specs=pl.BlockSpec((1, Cout, ts), lambda bi, si: (bi, 0, si)),
        ),
        compiler_params=pltpu.CompilerParams(
            dimension_semantics=("parallel", "parallel")),
    )(x3, w, b2)


def _channel_mix(x_nchw: jax.Array, w: jax.Array, b: jax.Array,
                 use_pallas: bool = True) -> jax.Array:
    """1x1 conv over channel axis 1 of an N-D array (B, C_in, *spatial).

    w: (C_out, C_in), b: (C_out,).  Returns (B, C_out, *spatial)."""
    B, Cin = x_nchw.shape[0], x_nchw.shape[1]
    spatial = x_nchw.shape[2:]
    S = int(np.prod(spatial)) if spatial else 1
    Cout = w.shape[0]
    x3 = x_nchw.reshape(B, Cin, S)            # contiguous reshape, no transpose
    if use_pallas and S >= _LANE:
        y = _pointwise_channel_mix_pallas(x3, w, b)
    else:
        # Lane-sparse / tiny problems: a Pallas launch costs more than the op.
        y = jnp.einsum('oi,bis->bos', w, x3) + b[None, :, None]
    return y.reshape((B, Cout) + spatial)


# -------------------------- NFN glue (plain JAX) ---------------------------
@dataclass
class LayerSpec:
    shape: Tuple[int, ...]  # (n_out, n_in) linear, (n_out, n_in, kh, kw) conv


@dataclass
class NetworkSpec:
    weight_spec: List[LayerSpec]

    def __len__(self):
        return len(self.weight_spec)


def shape_wsfeat_symmetry(weights, biases, spec: NetworkSpec):
    """einops: 'b c o i h w -> b (c h w) o i' for conv weights."""
    reshaped = []
    for w, ws in zip(weights, spec.weight_spec):
        if len(ws.shape) == 2:
            reshaped.append(w)
        else:
            B, C, O, I, H, W = w.shape
            reshaped.append(
                jnp.transpose(w, (0, 1, 4, 5, 2, 3)).reshape(B, C * H * W, O, I))
    return reshaped, biases


def unshape_wsfeat_symmetry(weights, biases, spec: NetworkSpec):
    """einops: 'b (c h w) o i -> b c o i h w' for conv weights."""
    reshaped = []
    for w, ws in zip(weights, spec.weight_spec):
        if len(ws.shape) == 2:
            reshaped.append(w)
        else:
            B, CHW, O, I = w.shape
            H, W = ws.shape[2], ws.shape[3]
            C = CHW // (H * W)
            reshaped.append(
                jnp.transpose(w.reshape(B, C, H, W, O, I), (0, 1, 4, 5, 2, 3)))
    return reshaped, biases


class Pointwise:
    """JAX/Pallas port of nfn.layers.Pointwise (full exchangeability)."""

    def __init__(self, network_spec: NetworkSpec, in_channels: int,
                 out_channels: int, key: jax.Array):
        self.network_spec = network_spec
        self.in_channels = in_channels
        self.out_channels = out_channels
        self.filter_facs = [int(np.prod(ws.shape[2:]))
                            for ws in network_spec.weight_spec]
        self.params = []
        for fac in self.filter_facs:
            key, k1, k2, k3, k4 = jax.random.split(key, 5)
            cin, cout = fac * in_channels, fac * out_channels
            bw = 1.0 / np.sqrt(cin)
            wk = jax.random.uniform(k1, (cout, cin), jnp.float32, -bw, bw)
            bk = jax.random.uniform(k2, (cout,), jnp.float32, -bw, bw)
            bb = 1.0 / np.sqrt(in_channels)
            wb = jax.random.uniform(k3, (out_channels, in_channels),
                                    jnp.float32, -bb, bb)
            bbias = jax.random.uniform(k4, (out_channels,), jnp.float32, -bb, bb)
            self.params.append((wk, bk, wb, bbias))

    def __call__(self, weights, biases, use_pallas: bool = True):
        ws, bs = shape_wsfeat_symmetry(weights, biases, self.network_spec)
        out_weights, out_biases = [], []
        for (w, b), (wk, bk, wb, bbias) in zip(zip(ws, bs), self.params):
            out_weights.append(_channel_mix(w, wk, bk, use_pallas))   # 1x1 Conv2d
            out_biases.append(_channel_mix(b, wb, bbias, use_pallas)) # k=1 Conv1d
        return unshape_wsfeat_symmetry(out_weights, out_biases, self.network_spec)


# --------------------------------- main ------------------------------------
if __name__ == "__main__":
    B, C_IN, C_OUT = 2, 4, 6
    # Underlying network: one linear layer (16, 8), one 3x3 conv layer (8, 16).
    spec = NetworkSpec([LayerSpec((16, 8)), LayerSpec((8, 16, 3, 3))])

    key = jax.random.PRNGKey(0)
    key, kw0, kb0, kw1, kb1, kp = jax.random.split(key, 6)
    weights = [
        jax.random.normal(kw0, (B, C_IN, 16, 8), jnp.float32),        # linear wfeat
        jax.random.normal(kw1, (B, C_IN, 8, 16, 3, 3), jnp.float32),  # conv wfeat
    ]
    biases = [
        jax.random.normal(kb0, (B, C_IN, 16), jnp.float32),
        jax.random.normal(kb1, (B, C_IN, 8), jnp.float32),
    ]

    layer = Pointwise(spec, C_IN, C_OUT, kp)

    # Pallas path: weight features (S = n_out*n_in = 128) go through the
    # kernel (both the VPU and MXU in-kernel paths get exercised); the tiny
    # bias features (S = 16, 8) take the XLA fallback by design.
    out_w, out_b = layer(weights, biases, use_pallas=True)
    out_w = [jax.block_until_ready(o) for o in out_w]
    out_b = [jax.block_until_ready(o) for o in out_b]

    # Pure-JAX reference check.
    ref_w, ref_b = layer(weights, biases, use_pallas=False)
    for o, r in zip(out_w + out_b, ref_w + ref_b):
        assert o.shape == r.shape
        np.testing.assert_allclose(np.asarray(o), np.asarray(r),
                                   rtol=1e-4, atol=1e-4)

    assert out_w[0].shape == (B, C_OUT, 16, 8)
    assert out_w[1].shape == (B, C_OUT, 8, 16, 3, 3)
    assert out_b[0].shape == (B, C_OUT, 16)
    assert out_b[1].shape == (B, C_OUT, 8)

    print("KERNEL_OK")
</pallas_src>

<mosaic_0001>
module attributes {stable_mosaic.version = 11 : i64} {
  func.func @_mix_kernel(%arg0: i32, %arg1: i32, %arg2: memref<1x4x128xf32, #tpu.memory_space<vmem>>, %arg3: memref<6x4xf32, #tpu.memory_space<vmem>>, %arg4: memref<6x1xf32, #tpu.memory_space<vmem>>, %arg5: memref<1x6x128xf32, #tpu.memory_space<vmem>>) attributes {dimension_semantics = [#tpu.dimension_semantics<parallel>, #tpu.dimension_semantics<parallel>], iteration_bounds = array<i64: 2, 1>, scalar_prefetch = 0 : i64, scratch_operands = 0 : i64, tpu.core_type = #tpu.core_type<tc>, window_params = [{transform_indices = @transform_0, window_bounds = array<i64: 1, 4, 128>}, {pipeline_mode = #tpu.pipeline_mode<synchronous>, transform_indices = @transform_1, window_bounds = array<i64: 6, 4>}, {pipeline_mode = #tpu.pipeline_mode<synchronous>, transform_indices = @transform_2, window_bounds = array<i64: 6, 1>}, {transform_indices = @transform_3, window_bounds = array<i64: 1, 6, 128>}]} {
    %c0 = arith.constant 0 : index
    %c0_0 = arith.constant 0 : index
    %c0_1 = arith.constant 0 : index
    %0 = vector.load %arg2[%c0, %c0_0, %c0_1] : memref<1x4x128xf32, #tpu.memory_space<vmem>>, vector<1x4x128xf32>
    %1 = vector.shape_cast %0 : vector<1x4x128xf32> to vector<4x128xf32>
    %c0_2 = arith.constant 0 : index
    %c0_3 = arith.constant 0 : index
    %2 = vector.load %arg3[%c0_2, %c0_3] : memref<6x4xf32, #tpu.memory_space<vmem>>, vector<6x4xf32>
    %c0_4 = arith.constant 0 : index
    %c0_5 = arith.constant 0 : index
    %3 = vector.load %arg4[%c0_4, %c0_5] : memref<6x1xf32, #tpu.memory_space<vmem>>, vector<6x1xf32>
    %4 = vector.extract_strided_slice %2 {offsets = [0, 0], sizes = [6, 1], strides = [1, 1]} : vector<6x4xf32> to vector<6x1xf32>
    %5 = vector.extract_strided_slice %1 {offsets = [0, 0], sizes = [1, 128], strides = [1, 1]} : vector<4x128xf32> to vector<1x128xf32>
    %6 = vector.broadcast %4 : vector<6x1xf32> to vector<6x128xf32>
    %7 = vector.broadcast %5 : vector<1x128xf32> to vector<6x128xf32>
    %8 = arith.mulf %6, %7 : vector<6x128xf32>
    %9 = vector.extract_strided_slice %2 {offsets = [0, 1], sizes = [6, 1], strides = [1, 1]} : vector<6x4xf32> to vector<6x1xf32>
    %10 = vector.extract_strided_slice %1 {offsets = [1, 0], sizes = [1, 128], strides = [1, 1]} : vector<4x128xf32> to vector<1x128xf32>
    %11 = vector.broadcast %9 : vector<6x1xf32> to vector<6x128xf32>
    %12 = vector.broadcast %10 : vector<1x128xf32> to vector<6x128xf32>
    %13 = arith.mulf %11, %12 : vector<6x128xf32>
    %14 = arith.addf %8, %13 : vector<6x128xf32>
    %15 = vector.extract_strided_slice %2 {offsets = [0, 2], sizes = [6, 1], strides = [1, 1]} : vector<6x4xf32> to vector<6x1xf32>
    %16 = vector.extract_strided_slice %1 {offsets = [2, 0], sizes = [1, 128], strides = [1, 1]} : vector<4x128xf32> to vector<1x128xf32>
    %17 = vector.broadcast %15 : vector<6x1xf32> to vector<6x128xf32>
    %18 = vector.broadcast %16 : vector<1x128xf32> to vector<6x128xf32>
    %19 = arith.mulf %17, %18 : vector<6x128xf32>
    %20 = arith.addf %14, %19 : vector<6x128xf32>
    %21 = vector.extract_strided_slice %2 {offsets = [0, 3], sizes = [6, 1], strides = [1, 1]} : vector<6x4xf32> to vector<6x1xf32>
    %22 = vector.extract_strided_slice %1 {offsets = [3, 0], sizes = [1, 128], strides = [1, 1]} : vector<4x128xf32> to vector<1x128xf32>
    %23 = vector.broadcast %21 : vector<6x1xf32> to vector<6x128xf32>
    %24 = vector.broadcast %22 : vector<1x128xf32> to vector<6x128xf32>
    %25 = arith.mulf %23, %24 : vector<6x128xf32>
    %26 = arith.addf %20, %25 : vector<6x128xf32>
    %27 = vector.broadcast %3 : vector<6x1xf32> to vector<6x128xf32>
    %28 = arith.addf %26, %27 : vector<6x128xf32>
    %c0_6 = arith.constant 0 : index
    %c0_7 = arith.constant 0 : index
    %c0_8 = arith.constant 0 : index
    %29 = vector.load %arg5[%c0_6, %c0_7, %c0_8] : memref<1x6x128xf32, #tpu.memory_space<vmem>>, vector<1x6x128xf32>
    %30 = vector.shape_cast %29 : vector<1x6x128xf32> to vector<6x128xf32>
    %31 = vector.shape_cast %28 : vector<6x128xf32> to vector<1x6x128xf32>
    tpu.vector_store %arg5[%c0_6, %c0_7, %c0_8], %31 {strides = array<i32>} : memref<1x6x128xf32, #tpu.memory_space<vmem>>, vector<1x6x128xf32>,
    return
  }
  func.func @transform_0(%arg0: i32, %arg1: i32) -> (i32, i32, i32) {
    %c0_i32 = arith.constant 0 : i32
    %c0_i32_0 = arith.constant 0 : i32
    return %arg0, %c0_i32, %arg1 : i32, i32, i32
  }
  func.func @transform_1(%arg0: i32, %arg1: i32) -> (i32, i32) {
    %c0_i32 = arith.constant 0 : i32
    %c0_i32_0 = arith.constant 0 : i32
    %c0_i32_1 = arith.constant 0 : i32
    return %c0_i32, %c0_i32_0 : i32, i32
  }
  func.func @transform_2(%arg0: i32, %arg1: i32) -> (i32, i32) {
    %c0_i32 = arith.constant 0 : i32
    %c0_i32_0 = arith.constant 0 : i32
    %c0_i32_1 = arith.constant 0 : i32
    return %c0_i32, %c0_i32_0 : i32, i32
  }
  func.func @transform_3(%arg0: i32, %arg1: i32) -> (i32, i32, i32) {
    %c0_i32 = arith.constant 0 : i32
    %c0_i32_0 = arith.constant 0 : i32
    return %arg0, %c0_i32, %arg1 : i32, i32, i32
  }
}

</mosaic_0001>

<llo_original>
// kernel: tpu_custom_call.1
$region0: #{tpu_custom_call.1}
  #allocation0 [shape = 'u32[]', space=smem, size = 0x4, offset = 0x4, fixed_abs, tag = 'smem constant byte address 0x4 - core index']
  #allocation1 [shape = 'u32[72,128]{1,0:T(1,128)}', space=vmem, size = 0x9000, scoped, tag = 'internal scratch']
  %s0 = inlined_call_operand.vmem [shape: f32[2,4,128], index: 0, kind: input, shape index: {}]
  %s1 = inlined_call_operand.vmem [shape: f32[6,4], index: 1, kind: input, shape index: {}]
  %s2 = inlined_call_operand.vmem [shape: f32[6,1], index: 2, kind: input, shape index: {}]
  %s3 = inlined_call_operand.vmem [shape: f32[2,6,128], index: 3, kind: output, shape index: {}]
  %s4 = sld [smem:[#allocation0]]
  $region45: #{tpu_custom_call.1} parent=0
    _
  %s6 = ssub.s32 1, %s4
  %s7 = scalar_select 0, %s6, %s4
  loop: start=0, step=1, limit=4
  $region2: #{tpu_custom_call.1} parent=0 // loop_pre_header
    _
  $region3: #{tpu_custom_call.1} parent=0 // loop_header
    %s9 = sphi 0, %s13
    %p10 = scmp.ge.s32.totalorder %s9, 4
    %s16 = sphi 0, %s28
    %s17 = sphi 0, %s24
    %s18 = sphi 0, %s16
    %s19 = sphi 0, %s17
    %s20 = sphi 0, %s18
    %s21 = sphi 0, %s19
    %s33 = sphi 0, %s35
    %s36 = sphi 0, %s33
    %s37 = sphi 0, %s36
    %s53 = sphi 0, %s37
    %s57 = sphi 0, %s57
    %s59 = sphi 0, %s57
    %s60 = sphi 0, %s59
    %s74 = sphi 0, %s60
    %s78 = sphi 0, %s78
    %s80 = sphi 0, %s78
    %s81 = sphi 0, %s80
    %s95 = sphi 0, %s81
    %s103 = sphi 0, %s105
    %s106 = sphi 0, %s103
    %s107 = sphi 0, %s106
    %s123 = sphi 0, %s107
  $region4: #{tpu_custom_call.1} parent=0 // loop_header_branch
    %12 = sbr.rel (%p10) target = $region8
  $region5: #{tpu_custom_call.1} parent=0 // loop_body
    %s14 = ssub.s32 %s9, 1
    %s15 = ssub.s32 %s9, 2
    %s22 = sadd.s32 1, %s17
    %p23 = scmp.ge.s32.totalorder %s22, 1
    %s24 = scalar_select %p23, 0, %s22
    %s25 = sadd.s32 1, %s16
    %s26 = scalar_select %p23, %s25, %s16
    %p27 = scmp.ge.s32.totalorder %s26, 2
    %s28 = scalar_select %p27, 0, %s26
    %s29 = ssub.s32 %s16, %s28
    %s30 = ssub.s32 %s17, %s24
    %s31 = sor.u32 %s29, %s30
    %p32 = scmp.eq.s32.totalorder %s31, 0
    %s34 = sadd.s32 %s33, 1
    %s35 = scalar_select %p32, %s33, %s34
    %p38 = pneg %p32
    %p39 = scmp.eq.s32.totalorder %s9, 1
    %p40 = por %p38, %p39
    %p41 = scmp.ne.s32.totalorder %s33, %s36
    %p42 = scmp.eq.s32.totalorder %s9, 0
    %p43 = por %p41, %p42
    %p44 = scmp.ne.s32.totalorder %s33, %s36
    %p45 = scmp.eq.s32.totalorder %s14, 1
    %p46 = por %p44, %p45
    %p47 = scmp.ne.s32.totalorder %s36, %s37
    %p48 = scmp.eq.s32.totalorder %s14, 0
    %p49 = por %p47, %p48
    %p50 = scmp.ne.s32.totalorder %s36, %s37
    %p51 = scmp.eq.s32.totalorder %s15, 1
    %p52 = por %p50, %p51
    %p54 = scmp.ne.s32.totalorder %s37, %s53
    %p55 = scmp.eq.s32.totalorder %s15, 0
    %p56 = por %p54, %p55
    %s58 = sadd.s32 %s57, 1
    %p61 = scmp.eq.s32.totalorder %s9, 1
    %p62 = scmp.ne.s32.totalorder %s57, %s59
    %p63 = scmp.eq.s32.totalorder %s9, 0
    %p64 = por %p62, %p63
    %p65 = scmp.ne.s32.totalorder %s57, %s59
    %p66 = scmp.eq.s32.totalorder %s14, 1
    %p67 = por %p65, %p66
    %p68 = scmp.ne.s32.totalorder %s59, %s60
    %p69 = scmp.eq.s32.totalorder %s14, 0
    %p70 = por %p68, %p69
    %p71 = scmp.ne.s32.totalorder %s59, %s60
    %p72 = scmp.eq.s32.totalorder %s15, 1
    %p73 = por %p71, %p72
    %p75 = scmp.ne.s32.totalorder %s60, %s74
    %p76 = scmp.eq.s32.totalorder %s15, 0
    %p77 = por %p75, %p76
    %s79 = sadd.s32 %s78, 1
    %p82 = scmp.eq.s32.totalorder %s9, 1
    %p83 = scmp.ne.s32.totalorder %s78, %s80
    %p84 = scmp.eq.s32.totalorder %s9, 0
    %p85 = por %p83, %p84
    %p86 = scmp.ne.s32.totalorder %s78, %s80
    %p87 = scmp.eq.s32.totalorder %s14, 1
    %p88 = por %p86, %p87
    %p89 = scmp.ne.s32.totalorder %s80, %s81
    %p90 = scmp.eq.s32.totalorder %s14, 0
    %p91 = por %p89, %p90
    %p92 = scmp.ne.s32.totalorder %s80, %s81
    %p93 = scmp.eq.s32.totalorder %s15, 1
    %p94 = por %p92, %p93
    %p96 = scmp.ne.s32.totalorder %s81, %s95
    %p97 = scmp.eq.s32.totalorder %s15, 0
    %p98 = por %p96, %p97
    %s99 = ssub.s32 %s16, %s28
    %s100 = ssub.s32 %s17, %s24
    %s101 = sor.u32 %s99, %s100
    %p102 = scmp.eq.s32.totalorder %s101, 0
    %s104 = sadd.s32 %s103, 1
    %s105 = scalar_select %p102, %s103, %s104
    %p108 = pneg %p102
    %p109 = scmp.eq.s32.totalorder %s9, 1
    %p110 = por %p108, %p109
    %p111 = scmp.ne.s32.totalorder %s103, %s106
    %p112 = scmp.eq.s32.totalorder %s9, 0
    %p113 = por %p111, %p112
    %p114 = scmp.ne.s32.totalorder %s103, %s106
    %p115 = scmp.eq.s32.totalorder %s14, 1
    %p116 = por %p114, %p115
    %p117 = scmp.ne.s32.totalorder %s106, %s107
    %p118 = scmp.eq.s32.totalorder %s14, 0
    %p119 = por %p117, %p118
    %p120 = scmp.ne.s32.totalorder %s106, %s107
    %p121 = scmp.eq.s32.totalorder %s15, 1
    %p122 = por %p120, %p121
    %p124 = scmp.ne.s32.totalorder %s107, %s123
    %p125 = scmp.eq.s32.totalorder %s15, 0
    %p126 = por %p124, %p125
    %p127 = scmp.le.s32.totalorder 1, %s9
    %p128 = scmp.lt.s32.totalorder %s9, 3
    %p129 = pnand %p127, %p128
    %p130 = pneg %p129
    // Predicated region
    $region9: #{tpu_custom_call.1} parent=5 // pred_check
      _
    $region10: #{tpu_custom_call.1} parent=5 // pred_check_branch
      %132 = sbr.rel (%p129) target = $region12
    $region11: #{tpu_custom_call.1} parent=5 // pred_region
      %s133 = ssub.s32 %s9, 1
      // Predicated region
      $region13: #{tpu_custom_call.1} parent=11 // pred_check
        %p134 = pneg %p70
      $region14: #{tpu_custom_call.1} parent=11 // pred_check_branch
        %136 = sbr.rel (%p134) target = $region16
      $region15: #{tpu_custom_call.1} parent=11 // pred_region
        _
      $region16: #{tpu_custom_call.1} parent=11 // pred_fallthru
        _
      // Predicated region
      $region17: #{tpu_custom_call.1} parent=11 // pred_check
        %p137 = pneg %p91
      $region18: #{tpu_custom_call.1} parent=11 // pred_check_branch
        %139 = sbr.rel (%p137) target = $region20
      $region19: #{tpu_custom_call.1} parent=11 // pred_region
        _
      $region20: #{tpu_custom_call.1} parent=11 // pred_fallthru
        _
    $region12: #{tpu_custom_call.1} parent=5 // pred_fallthru
      _
    %p140 = scmp.lt.s32.totalorder %s9, 2
    // Predicated region
    $region21: #{tpu_custom_call.1} parent=5 // pred_check
      %p141 = pneg %p140
    $region22: #{tpu_custom_call.1} parent=5 // pred_check_branch
      %143 = sbr.rel (%p141) target = $region24
    $region23: #{tpu_custom_call.1} parent=5 // pred_region
      // Predicated region
      $region25: #{tpu_custom_call.1} parent=23 // pred_check
        %p144 = pneg %p43
      $region26: #{tpu_custom_call.1} parent=23 // pred_check_branch
        %146 = sbr.rel (%p144) target = $region28
      $region27: #{tpu_custom_call.1} parent=23 // pred_region
        %p147 = scmp.lt.s32.totalorder %s16, 1
        %s148 = scalar_select %p147, %s16, 1
        %p149 = scmp.lt.s32.totalorder %s17, 0
        %s150 = scalar_select %p149, %s17, 0
        %s151 = sadd.s32 %s150, %s148
        %s152 = smul.addr %s151, 4
        %s153 = scalar_lea.vmem %s0, %s152
      $region28: #{tpu_custom_call.1} parent=23 // pred_fallthru
        _
    $region24: #{tpu_custom_call.1} parent=5 // pred_fallthru
      _
    %p154 = scmp.le.s32.totalorder 1, %s9
    %p155 = scmp.lt.s32.totalorder %s9, 3
    %p156 = pnand %p154, %p155
    %p157 = pneg %p156
    // Predicated region
    $region29: #{tpu_custom_call.1} parent=5 // pred_check
      _
    $region30: #{tpu_custom_call.1} parent=5 // pred_check_branch
      %159 = sbr.rel (%p156) target = $region32
    $region31: #{tpu_custom_call.1} parent=5 // pred_region
      %s160 = ssub.s32 %s9, 1
      %p161 = scmp.lt.s32.totalorder %s18, 1
      %s162 = scalar_select %p161, %s18, 1
      %p163 = scmp.lt.s32.totalorder %s19, 0
      %s164 = scalar_select %p163, %s19, 0
      %s165 = sadd.s32 %s164, %s162
      %s166 = smul.addr %s165, 4
      %s167 = scalar_lea.vmem %s0, %s166
      %p168 = pneg %p49
      %p169 = pneg %p46
      %p170 = pneg %p70
      %p171 = pneg %p67
      %p172 = pneg %p91
      %p173 = pneg %p88
      %p174 = pneg %p119
      %p175 = pneg %p116
      %p176 = scmp.lt.s32.totalorder %s18, 1
      %s177 = scalar_select %p176, %s18, 1
      %p178 = scmp.lt.s32.totalorder %s19, 0
      %s179 = scalar_select %p178, %s19, 0
      %s180 = sadd.s32 %s179, %s177
      %s181 = smul.addr %s180, 8
      %s182 = scalar_lea.vmem %s3, %s181
      %p183 = scmp.lt.s32.totalorder %s18, 1
      %s184 = scalar_select %p183, %s18, 1
      %p185 = scmp.lt.s32.totalorder %s19, 0
      %s186 = scalar_select %p185, %s19, 0
      %s187 = sadd.s32 %s186, %s184
      %s188 = smul.addr %s187, 4
      %s189 = scalar_lea.vmem %s0, %s188
      %p190 = scmp.lt.s32.totalorder %s18, 1
      %s191 = scalar_select %p190, %s18, 1
      %p192 = scmp.lt.s32.totalorder %s19, 0
      %s193 = scalar_select %p192, %s19, 0
      %s194 = sadd.s32 %s193, %s191
      %s195 = smul.addr %s194, 8
      %s196 = scalar_lea.vmem %s3, %s195
      %v197 = vld [vmem:[%s189] sm:$0xf]
      %v198 = vld [vmem:[%s1] sm:$0x3f]
      %v199 = vld [vmem:[%s2] sm:$0x3f]
      %201 = vset.pattern.permute.xlu0 0
      %202 = vperm.xlu0 %201, %v198
      %v203 = vpop.permute.xlu0 %202
      %v205 = vperm.slane %v197, 0
      %v206 = vmul.f32 %v203, %v205
      %207 = vset.pattern.permute.xlu0 1
      %208 = vperm.xlu0 %207, %v198
      %v209 = vpop.permute.xlu0 %208
      %v211 = vperm.slane %v197, 1
      %v212 = vmul.f32 %v209, %v211
      %v213 = vadd.f32 %v206, %v212
      %214 = vset.pattern.permute.xlu0 2
      %215 = vperm.xlu0 %214, %v198
      %v216 = vpop.permute.xlu0 %215
      %v218 = vperm.slane %v197, 2
      %v219 = vmul.f32 %v216, %v218
      %v220 = vadd.f32 %v213, %v219
      %221 = vset.pattern.permute.xlu0 3
      %222 = vperm.xlu0 %221, %v198
      %v223 = vpop.permute.xlu0 %222
      %v225 = vperm.slane %v197, 3
      %v226 = vmul.f32 %v223, %v225
      %v227 = vadd.f32 %v220, %v226
      %229 = vset.pattern.permute.xlu0 0
      %230 = vperm.xlu0 %229, %v199
      %v231 = vpop.permute.xlu0 %230
      %v233 = vadd.f32 %v227, %v231
      %234 = vst [vmem:[%s196] sm:$0x3f] %v233
      %p235 = scmp.lt.s32.totalorder %s18, 1
      %s236 = scalar_select %p235, %s18, 1
      %p237 = scmp.lt.s32.totalorder %s19, 0
      %s238 = scalar_select %p237, %s19, 0
      %s239 = sadd.s32 %s238, %s236
      %s240 = smul.addr %s239, 8
      %s241 = scalar_lea.vmem %s3, %s240
      // Predicated region
      $region33: #{tpu_custom_call.1} parent=31 // pred_check
        %p242 = pneg %p116
      $region34: #{tpu_custom_call.1} parent=31 // pred_check_branch
        %244 = sbr.rel (%p242) target = $region36
      $region35: #{tpu_custom_call.1} parent=31 // pred_region
        _
      $region36: #{tpu_custom_call.1} parent=31 // pred_fallthru
        _
    $region32: #{tpu_custom_call.1} parent=5 // pred_fallthru
      _
    %p245 = scmp.le.s32.totalorder 2, %s9
    // Predicated region
    $region37: #{tpu_custom_call.1} parent=5 // pred_check
      %p246 = pneg %p245
    $region38: #{tpu_custom_call.1} parent=5 // pred_check_branch
      %248 = sbr.rel (%p246) target = $region40
    $region39: #{tpu_custom_call.1} parent=5 // pred_region
      %s249 = ssub.s32 %s9, 2
      // Predicated region
      $region41: #{tpu_custom_call.1} parent=39 // pred_check
        %p250 = pneg %p122
      $region42: #{tpu_custom_call.1} parent=39 // pred_check_branch
        %252 = sbr.rel (%p250) target = $region44
      $region43: #{tpu_custom_call.1} parent=39 // pred_region
        %p253 = scmp.lt.s32.totalorder %s20, 1
        %s254 = scalar_select %p253, %s20, 1
        %p255 = scmp.lt.s32.totalorder %s21, 0
        %s256 = scalar_select %p255, %s21, 0
        %s257 = sadd.s32 %s256, %s254
        %s258 = smul.addr %s257, 8
        %s259 = scalar_lea.vmem %s3, %s258
      $region44: #{tpu_custom_call.1} parent=39 // pred_fallthru
        _
    $region40: #{tpu_custom_call.1} parent=5 // pred_fallthru
      _
  $region6: #{tpu_custom_call.1} parent=0 // loop_footer
    %s13 = sadd.s32 1, %s9
  $region7: #{tpu_custom_call.1} parent=0 // loop_footer_branch
    %8 = sbr.rel target = $region3
  $region8: #{tpu_custom_call.1} parent=0 // loop_exit
    _

</llo_original>
